<compile_context>
chip_gen: v5e
topology: v5e:2x2
jax: 0.10.0
libtpu: 0.0.40
codegen_flags: <defaults>
</compile_context>

<pallas_src>
from functools import partial

import jax
import jax.numpy as jnp
from jax.experimental import pallas as pl
from jax.experimental.pallas import tpu as pltpu

INPUT_SIZE = 784
HIDDEN_SIZE = 16
OUTPUT_SIZE = 10
NUM_LAYERS = 3        # number of hidden->hidden blocks
LANE = 128
ROW_ALIGN = 16        # round batch tiles to 16 rows (robust for any dtype)


def _round_up(n, m):
    return ((n + m - 1) // m) * m


def _cdiv(a, b):
    return -(-a // b)


def _mlp_kernel(x_ref, w_in_ref, wh0_ref, wh1_ref, wh2_ref, w_out_ref, o_ref):
    # x tile arrives in its HBM dtype (f32 here); cast to bf16 in-register for
    # the MXU — avoids a separate XLA convert pass over all of x in HBM.
    x = x_ref[...].astype(jnp.bfloat16)
    h = jnp.dot(x, w_in_ref[...], preferred_element_type=jnp.float32)
    h = jnp.maximum(h, 0.0)  # ReLU in f32 (no bf16 VPU dependence; safe on v5e)

    # Hidden layers: tiny 16x16 matmuls. Feed bf16 operands to the MXU (what
    # DEFAULT precision would do anyway) and accumulate in f32.
    for w_ref in (wh0_ref, wh1_ref, wh2_ref):
        h = jnp.dot(h.astype(jnp.bfloat16), w_ref[...],
                    preferred_element_type=jnp.float32)
        h = jnp.maximum(h, 0.0)

    # Output layer: narrow (tile, 10) f32 store. The masked lane stores are
    # VMEM-side and invisible in this DMA-bound kernel.
    o_ref[...] = jnp.dot(h.astype(jnp.bfloat16), w_out_ref[...],
                         preferred_element_type=jnp.float32).astype(o_ref.dtype)


def prepare_weights(weights_f32):
    """One-time prep: (in, out) layout, bf16 storage (halves weight HBM reads)."""
    return tuple(w.astype(jnp.bfloat16) for w in weights_f32)


@partial(jax.jit, static_argnames=("batch_tile", "min_split_rows"))
def mlp_forward(x, weights_bf16, *, batch_tile=2048, min_split_rows=256):
    """x: (B, INPUT_SIZE). weights_bf16: 5 bf16 matrices in (in, out) layout.

    Returns (B, OUTPUT_SIZE) float32 logits.
    """
    B = x.shape[0]
    w_in, wh0, wh1, wh2, w_out = weights_bf16

    # --- tile / grid sizing -------------------------------------------------
    num_tiles = max(1, _cdiv(B, batch_tile))
    # Ensure >=2 grid steps on mid-size batches so the "parallel" axis shards
    # across both v7x TensorCores instead of leaving one idle.
    if num_tiles == 1 and B >= min_split_rows:
        num_tiles = 2
    tile = max(ROW_ALIGN, _round_up(_cdiv(B, num_tiles), ROW_ALIGN))
    Bp = tile * num_tiles

    if Bp != B:
        # Zero padding is safe only because there are no biases: padded rows
        # stay zero through every layer and are sliced off below.
        x = jnp.pad(x, ((0, Bp - B), (0, 0)))

    grid = (num_tiles,)

    x_spec = pl.BlockSpec((tile, INPUT_SIZE), lambda i: (i, 0))
    w_in_spec = pl.BlockSpec((INPUT_SIZE, HIDDEN_SIZE), lambda i: (0, 0))
    wh_spec = pl.BlockSpec((HIDDEN_SIZE, HIDDEN_SIZE), lambda i: (0, 0))
    w_out_spec = pl.BlockSpec((HIDDEN_SIZE, OUTPUT_SIZE), lambda i: (0, 0))
    o_spec = pl.BlockSpec((tile, OUTPUT_SIZE), lambda i: (i, 0))

    # --- VMEM budget (double-buffered, padded layout) -----------------------
    x_bytes = x.dtype.itemsize
    in_lanes = _round_up(INPUT_SIZE, LANE)           # 784 -> 896
    vmem_needed = (
        2 * tile * in_lanes * x_bytes                # x tiles (biggest consumer)
        + 2 * tile * LANE * 4                        # narrow f32 out tiles (lane pad)
        + 2 * in_lanes * LANE * 2                    # padded first-layer weight
        + (2 << 20))                                 # margin: small weights / misc
    vmem_limit = max(vmem_needed, 16 << 20)          # valid on v5e, << v7x physical

    # --- cost estimate -------------------------------------------------------
    weight_elems = (INPUT_SIZE * HIDDEN_SIZE
                    + NUM_LAYERS * HIDDEN_SIZE * HIDDEN_SIZE
                    + HIDDEN_SIZE * OUTPUT_SIZE)
    flops = 2 * Bp * (INPUT_SIZE * HIDDEN_SIZE
                      + NUM_LAYERS * HIDDEN_SIZE * HIDDEN_SIZE
                      + HIDDEN_SIZE * OUTPUT_SIZE)
    bytes_accessed = (Bp * INPUT_SIZE * x_bytes      # x as stored (no cast pass)
                      + weight_elems * 2             # bf16 weights
                      + Bp * OUTPUT_SIZE * 4)        # narrow f32 output

    out = pl.pallas_call(
        _mlp_kernel,
        out_shape=jax.ShapeDtypeStruct((Bp, OUTPUT_SIZE), jnp.float32),
        grid_spec=pltpu.PrefetchScalarGridSpec(
            num_scalar_prefetch=0,
            grid=grid,
            in_specs=[x_spec, w_in_spec, wh_spec, wh_spec, wh_spec, w_out_spec],
            out_specs=o_spec,
        ),
        compiler_params=pltpu.CompilerParams(
            dimension_semantics=("parallel",),
            vmem_limit_bytes=int(vmem_limit)),
        cost_estimate=pl.CostEstimate(
            flops=flops, transcendentals=0, bytes_accessed=bytes_accessed),
    )(x, w_in, wh0, wh1, wh2, w_out)

    return out[:B] if Bp != B else out


def init_params(key):
    """Deterministic init mimicking nn.Linear's uniform(-1/sqrt(fan_in), +).
    Returns weights already transposed to (in, out) layout, float32."""
    sizes = [(INPUT_SIZE, HIDDEN_SIZE)]
    sizes += [(HIDDEN_SIZE, HIDDEN_SIZE)] * NUM_LAYERS
    sizes += [(HIDDEN_SIZE, OUTPUT_SIZE)]
    ws = []
    for (fan_in, fan_out) in sizes:
        key, sub = jax.random.split(key)
        bound = 1.0 / jnp.sqrt(fan_in)
        # PyTorch weight is (out, in); sample that shape then transpose to (in, out).
        w_torch_layout = jax.random.uniform(
            sub, (fan_out, fan_in), dtype=jnp.float32, minval=-bound, maxval=bound)
        ws.append(jnp.transpose(w_torch_layout))
    return ws


def reference_forward(x, weights_f32):
    """Pure-JAX reference mirroring the kernel's quantization exactly:
    bf16 MXU operands, f32 accumulation, ReLU in f32."""
    ws = [w.astype(jnp.bfloat16) for w in weights_f32]
    h = x.astype(jnp.bfloat16)
    for w in ws[:-1]:
        h = jnp.maximum(jnp.dot(h, w, preferred_element_type=jnp.float32), 0.0)
        h = h.astype(jnp.bfloat16)
    return jnp.dot(h, ws[-1], preferred_element_type=jnp.float32)


if __name__ == "__main__":
    key = jax.random.PRNGKey(0)
    kx, kw = jax.random.split(key)

    batch = 12  # deliberately not a multiple of the 16-row tile quantum
    x = jax.random.normal(kx, (batch, INPUT_SIZE), dtype=jnp.float32)
    weights = init_params(kw)
    weights_bf16 = prepare_weights(weights)   # one-time weight prep (bf16)

    out = mlp_forward(x, weights_bf16)
    out = jax.block_until_ready(out)

    ref = reference_forward(x, weights)
    assert out.shape == (batch, OUTPUT_SIZE)
    assert jnp.allclose(out, ref, atol=1e-3, rtol=1e-3), "mismatch vs JAX reference"

    print("KERNEL_OK")
</pallas_src>

<mosaic_0001>
module attributes {stable_mosaic.version = 11 : i64} {
  func.func @_mlp_kernel(%arg0: i32, %arg1: memref<16x784xf32, #tpu.memory_space<vmem>>, %arg2: memref<784x16xbf16, #tpu.memory_space<vmem>>, %arg3: memref<16x16xbf16, #tpu.memory_space<vmem>>, %arg4: memref<16x16xbf16, #tpu.memory_space<vmem>>, %arg5: memref<16x16xbf16, #tpu.memory_space<vmem>>, %arg6: memref<16x10xbf16, #tpu.memory_space<vmem>>, %arg7: memref<16x10xf32, #tpu.memory_space<vmem>>) attributes {dimension_semantics = [#tpu.dimension_semantics<parallel>], iteration_bounds = array<i64: 1>, scalar_prefetch = 0 : i64, scratch_operands = 0 : i64, tpu.core_type = #tpu.core_type<tc>, window_params = [{transform_indices = @transform_0, window_bounds = array<i64: 16, 784>}, {pipeline_mode = #tpu.pipeline_mode<synchronous>, transform_indices = @transform_1, window_bounds = array<i64: 784, 16>}, {pipeline_mode = #tpu.pipeline_mode<synchronous>, transform_indices = @transform_2, window_bounds = array<i64: 16, 16>}, {pipeline_mode = #tpu.pipeline_mode<synchronous>, transform_indices = @transform_3, window_bounds = array<i64: 16, 16>}, {pipeline_mode = #tpu.pipeline_mode<synchronous>, transform_indices = @transform_4, window_bounds = array<i64: 16, 16>}, {pipeline_mode = #tpu.pipeline_mode<synchronous>, transform_indices = @transform_5, window_bounds = array<i64: 16, 10>}, {transform_indices = @transform_6, window_bounds = array<i64: 16, 10>}]} {
    %c0 = arith.constant 0 : index
    %c0_0 = arith.constant 0 : index
    %0 = vector.load %arg1[%c0, %c0_0] : memref<16x784xf32, #tpu.memory_space<vmem>>, vector<16x784xf32>
    %1 = arith.truncf %0 : vector<16x784xf32> to vector<16x784xbf16>
    %c0_1 = arith.constant 0 : index
    %c0_2 = arith.constant 0 : index
    %2 = vector.load %arg2[%c0_1, %c0_2] : memref<784x16xbf16, #tpu.memory_space<vmem>>, vector<784x16xbf16>
    %cst = arith.constant dense<0.000000e+00> : vector<16x16xf32>
    %3 = tpu.matmul %1, %2, %cst {dimension_numbers = #tpu.dot_dimension_numbers<[1], [0], [0], [1], [0, 0, 1, 1], [], []>} : vector<16x784xbf16>, vector<784x16xbf16>, vector<16x16xf32> -> vector<16x16xf32>
    %cst_3 = arith.constant 0.000000e+00 : f32
    %4 = vector.broadcast %cst_3 : f32 to vector<16x16xf32>
    %5 = arith.maximumf %3, %4 : vector<16x16xf32>
    %6 = arith.truncf %5 : vector<16x16xf32> to vector<16x16xbf16>
    %c0_4 = arith.constant 0 : index
    %c0_5 = arith.constant 0 : index
    %7 = vector.load %arg3[%c0_4, %c0_5] : memref<16x16xbf16, #tpu.memory_space<vmem>>, vector<16x16xbf16>
    %cst_6 = arith.constant dense<0.000000e+00> : vector<16x16xf32>
    %8 = tpu.matmul %6, %7, %cst_6 {dimension_numbers = #tpu.dot_dimension_numbers<[1], [0], [0], [1], [0, 0, 1, 1], [], []>} : vector<16x16xbf16>, vector<16x16xbf16>, vector<16x16xf32> -> vector<16x16xf32>
    %cst_7 = arith.constant 0.000000e+00 : f32
    %9 = vector.broadcast %cst_7 : f32 to vector<16x16xf32>
    %10 = arith.maximumf %8, %9 : vector<16x16xf32>
    %11 = arith.truncf %10 : vector<16x16xf32> to vector<16x16xbf16>
    %c0_8 = arith.constant 0 : index
    %c0_9 = arith.constant 0 : index
    %12 = vector.load %arg4[%c0_8, %c0_9] : memref<16x16xbf16, #tpu.memory_space<vmem>>, vector<16x16xbf16>
    %cst_10 = arith.constant dense<0.000000e+00> : vector<16x16xf32>
    %13 = tpu.matmul %11, %12, %cst_10 {dimension_numbers = #tpu.dot_dimension_numbers<[1], [0], [0], [1], [0, 0, 1, 1], [], []>} : vector<16x16xbf16>, vector<16x16xbf16>, vector<16x16xf32> -> vector<16x16xf32>
    %cst_11 = arith.constant 0.000000e+00 : f32
    %14 = vector.broadcast %cst_11 : f32 to vector<16x16xf32>
    %15 = arith.maximumf %13, %14 : vector<16x16xf32>
    %16 = arith.truncf %15 : vector<16x16xf32> to vector<16x16xbf16>
    %c0_12 = arith.constant 0 : index
    %c0_13 = arith.constant 0 : index
    %17 = vector.load %arg5[%c0_12, %c0_13] : memref<16x16xbf16, #tpu.memory_space<vmem>>, vector<16x16xbf16>
    %cst_14 = arith.constant dense<0.000000e+00> : vector<16x16xf32>
    %18 = tpu.matmul %16, %17, %cst_14 {dimension_numbers = #tpu.dot_dimension_numbers<[1], [0], [0], [1], [0, 0, 1, 1], [], []>} : vector<16x16xbf16>, vector<16x16xbf16>, vector<16x16xf32> -> vector<16x16xf32>
    %cst_15 = arith.constant 0.000000e+00 : f32
    %19 = vector.broadcast %cst_15 : f32 to vector<16x16xf32>
    %20 = arith.maximumf %18, %19 : vector<16x16xf32>
    %21 = arith.truncf %20 : vector<16x16xf32> to vector<16x16xbf16>
    %c0_16 = arith.constant 0 : index
    %c0_17 = arith.constant 0 : index
    %22 = vector.load %arg6[%c0_16, %c0_17] : memref<16x10xbf16, #tpu.memory_space<vmem>>, vector<16x10xbf16>
    %cst_18 = arith.constant dense<0.000000e+00> : vector<16x10xf32>
    %23 = tpu.matmul %21, %22, %cst_18 {dimension_numbers = #tpu.dot_dimension_numbers<[1], [0], [0], [1], [0, 0, 1, 1], [], []>} : vector<16x16xbf16>, vector<16x10xbf16>, vector<16x10xf32> -> vector<16x10xf32>
    %c0_19 = arith.constant 0 : index
    %c0_20 = arith.constant 0 : index
    %24 = vector.load %arg7[%c0_19, %c0_20] : memref<16x10xf32, #tpu.memory_space<vmem>>, vector<16x10xf32>
    tpu.vector_store %arg7[%c0_19, %c0_20], %23 {strides = array<i32>} : memref<16x10xf32, #tpu.memory_space<vmem>>, vector<16x10xf32>,
    return
  }
  func.func @transform_0(%arg0: i32) -> (i32, i32) {
    %c0_i32 = arith.constant 0 : i32
    %c0_i32_0 = arith.constant 0 : i32
    return %arg0, %c0_i32 : i32, i32
  }
  func.func @transform_1(%arg0: i32) -> (i32, i32) {
    %c0_i32 = arith.constant 0 : i32
    %c0_i32_0 = arith.constant 0 : i32
    %c0_i32_1 = arith.constant 0 : i32
    return %c0_i32, %c0_i32_0 : i32, i32
  }
  func.func @transform_2(%arg0: i32) -> (i32, i32) {
    %c0_i32 = arith.constant 0 : i32
    %c0_i32_0 = arith.constant 0 : i32
    %c0_i32_1 = arith.constant 0 : i32
    return %c0_i32, %c0_i32_0 : i32, i32
  }
  func.func @transform_3(%arg0: i32) -> (i32, i32) {
    %c0_i32 = arith.constant 0 : i32
    %c0_i32_0 = arith.constant 0 : i32
    %c0_i32_1 = arith.constant 0 : i32
    return %c0_i32, %c0_i32_0 : i32, i32
  }
  func.func @transform_4(%arg0: i32) -> (i32, i32) {
    %c0_i32 = arith.constant 0 : i32
    %c0_i32_0 = arith.constant 0 : i32
    %c0_i32_1 = arith.constant 0 : i32
    return %c0_i32, %c0_i32_0 : i32, i32
  }
  func.func @transform_5(%arg0: i32) -> (i32, i32) {
    %c0_i32 = arith.constant 0 : i32
    %c0_i32_0 = arith.constant 0 : i32
    %c0_i32_1 = arith.constant 0 : i32
    return %c0_i32, %c0_i32_0 : i32, i32
  }
  func.func @transform_6(%arg0: i32) -> (i32, i32) {
    %c0_i32 = arith.constant 0 : i32
    %c0_i32_0 = arith.constant 0 : i32
    return %arg0, %c0_i32 : i32, i32
  }
}

</mosaic_0001>

<llo_original>
// kernel: mlp_forward.1
$region0: #{mlp_forward.1}
  #allocation0 [shape = 'u32[]', space=smem, size = 0x4, offset = 0x4, fixed_abs, tag = 'smem constant byte address 0x4 - core index']
  #allocation1 [shape = 'u32[72,128]{1,0:T(1,128)}', space=vmem, size = 0x9000, scoped, tag = 'internal scratch']
  %s0 = inlined_call_operand.vmem [shape: f32[16,784], index: 0, kind: input, shape index: {}]
  %s1 = inlined_call_operand.vmem [shape: bf16[784,16], index: 1, kind: input, shape index: {}]
  %s2 = inlined_call_operand.vmem [shape: bf16[16,16], index: 2, kind: input, shape index: {}]
  %s3 = inlined_call_operand.vmem [shape: bf16[16,16], index: 3, kind: input, shape index: {}]
  %s4 = inlined_call_operand.vmem [shape: bf16[16,16], index: 4, kind: input, shape index: {}]
  %s5 = inlined_call_operand.vmem [shape: bf16[16,10], index: 5, kind: input, shape index: {}]
  %s6 = inlined_call_operand.hbm [shape: f32[16,10], index: 6, kind: output, shape index: {}]
  %s7 = sld [smem:[#allocation0]]
  $region34: #{mlp_forward.1} parent=0
    _
  %s9 = ssub.s32 1, %s7
  %s10 = scalar_select 0, %s9, %s7
  $region1: #{mlp_forward.1} parent=0
    #allocation2 [shape = 'u8[8192]{0}', space=vmem, size = 0x2000, scoped, tag = 'output window, operand 0, single buffered']
    #allocation3 [shape = 's32[1]{0}', space=sflag, size = 0x4, scoped, tag = 'scoped memory for mlp_forward.1']
    %11 = vsyncpa [#allocation3], 0
    // Predicated region
    $region2: #{mlp_forward.1} parent=1 // pred_check
      _
    $region3: #{mlp_forward.1} parent=1 // pred_check_branch
      %13 = sbr.rel (0) target = $region5
    $region4: #{mlp_forward.1} parent=1 // pred_region
      _
    $region5: #{mlp_forward.1} parent=1 // pred_fallthru
      _
    // Predicated region
    $region6: #{mlp_forward.1} parent=1 // pred_check
      _
    $region7: #{mlp_forward.1} parent=1 // pred_check_branch
      %15 = sbr.rel (0) target = $region9
    $region8: #{mlp_forward.1} parent=1 // pred_region
      _
    $region9: #{mlp_forward.1} parent=1 // pred_fallthru
      _
    // Predicated region
    $region10: #{mlp_forward.1} parent=1 // pred_check
      _
    $region11: #{mlp_forward.1} parent=1 // pred_check_branch
      %17 = sbr.rel (0) target = $region13
    $region12: #{mlp_forward.1} parent=1 // pred_region
      _
    $region13: #{mlp_forward.1} parent=1 // pred_fallthru
      _
    // Predicated region
    $region14: #{mlp_forward.1} parent=1 // pred_check
      _
    $region15: #{mlp_forward.1} parent=1 // pred_check_branch
      %19 = sbr.rel (0) target = $region17
    $region16: #{mlp_forward.1} parent=1 // pred_region
      _
    $region17: #{mlp_forward.1} parent=1 // pred_fallthru
      _
    // Predicated region
    $region18: #{mlp_forward.1} parent=1 // pred_check
      _
    $region19: #{mlp_forward.1} parent=1 // pred_check_branch
      %21 = sbr.rel (0) target = $region21
    $region20: #{mlp_forward.1} parent=1 // pred_region
      _
    $region21: #{mlp_forward.1} parent=1 // pred_fallthru
      _
    // Predicated region
    $region22: #{mlp_forward.1} parent=1 // pred_check
      _
    $region23: #{mlp_forward.1} parent=1 // pred_check_branch
      %23 = sbr.rel (0) target = $region25
    $region24: #{mlp_forward.1} parent=1 // pred_region
      _
    $region25: #{mlp_forward.1} parent=1 // pred_fallthru
      _
    %v25 = vld [vmem:[%s0] sm:$0xff]
    %v26 = vld [vmem:[%s0 + $0x8] sm:$0xff]
    %v27 = vld [vmem:[%s0 + $0x10] sm:$0xff]
    %v28 = vld [vmem:[%s0 + $0x18] sm:$0xff]
    %v29 = vld [vmem:[%s0 + $0x20] sm:$0xff]
    %v30 = vld [vmem:[%s0 + $0x28] sm:$0xff]
    %v31 = vld [vmem:[%s0 + $0x30] sm:$0xff]
    %v32 = vld [vmem:[%s0 + $0x38] sm:$0xff]
    %v33 = vld [vmem:[%s0 + $0x40] sm:$0xff]
    %v34 = vld [vmem:[%s0 + $0x48] sm:$0xff]
    %v35 = vld [vmem:[%s0 + $0x50] sm:$0xff]
    %v36 = vld [vmem:[%s0 + $0x58] sm:$0xff]
    %v37 = vld [vmem:[%s0 + $0x60] sm:$0xff]
    %v38 = vld [vmem:[%s0 + $0x68] sm:$0xff]
    %v39 = vpack.c.bf16 %v32, %v25
    %v40 = vpack.c.bf16 %v33, %v26
    %v41 = vpack.c.bf16 %v34, %v27
    %v42 = vpack.c.bf16 %v35, %v28
    %v43 = vpack.c.bf16 %v36, %v29
    %v44 = vpack.c.bf16 %v37, %v30
    %v45 = vpack.c.bf16 %v38, %v31
    %v46 = vld [vmem:[%s1] sm:$0xf]
    %v47 = vld [vmem:[%s1 + $0x4] sm:$0xf]
    %v48 = vld [vmem:[%s1 + $0x8] sm:$0xf]
    %v49 = vld [vmem:[%s1 + $0xc] sm:$0xf]
    %v50 = vld [vmem:[%s1 + $0x10] sm:$0xf]
    %v51 = vld [vmem:[%s1 + $0x14] sm:$0xf]
    %v52 = vld [vmem:[%s1 + $0x18] sm:$0xf]
    %v53 = vld [vmem:[%s1 + $0x1c] sm:$0xf]
    %v54 = vld [vmem:[%s1 + $0x20] sm:$0xf]
    %v55 = vld [vmem:[%s1 + $0x24] sm:$0xf]
    %v56 = vld [vmem:[%s1 + $0x28] sm:$0xf]
    %v57 = vld [vmem:[%s1 + $0x2c] sm:$0xf]
    %v58 = vld [vmem:[%s1 + $0x30] sm:$0xf]
    %v59 = vld [vmem:[%s1 + $0x34] sm:$0xf]
    %v60 = vld [vmem:[%s1 + $0x38] sm:$0xf]
    %v61 = vld [vmem:[%s1 + $0x3c] sm:$0xf]
    %v62 = vld [vmem:[%s1 + $0x40] sm:$0xf]
    %v63 = vld [vmem:[%s1 + $0x44] sm:$0xf]
    %v64 = vld [vmem:[%s1 + $0x48] sm:$0xf]
    %v65 = vld [vmem:[%s1 + $0x4c] sm:$0xf]
    %v66 = vld [vmem:[%s1 + $0x50] sm:$0xf]
    %v67 = vld [vmem:[%s1 + $0x54] sm:$0xf]
    %v68 = vld [vmem:[%s1 + $0x58] sm:$0xf]
    %v69 = vld [vmem:[%s1 + $0x5c] sm:$0xf]
    %v70 = vld [vmem:[%s1 + $0x60] sm:$0xf]
    %v71 = vld [vmem:[%s1 + $0x64] sm:$0xf]
    %v72 = vld [vmem:[%s1 + $0x68] sm:$0xf]
    %v73 = vld [vmem:[%s1 + $0x6c] sm:$0xf]
    %v74 = vld [vmem:[%s1 + $0x70] sm:$0xf]
    %v75 = vld [vmem:[%s1 + $0x74] sm:$0xf]
    %v76 = vld [vmem:[%s1 + $0x78] sm:$0xf]
    %v77 = vld [vmem:[%s1 + $0x7c] sm:$0xf]
    %v78 = vld [vmem:[%s1 + $0x80] sm:$0xf]
    %v79 = vld [vmem:[%s1 + $0x84] sm:$0xf]
    %v80 = vld [vmem:[%s1 + $0x88] sm:$0xf]
    %v81 = vld [vmem:[%s1 + $0x8c] sm:$0xf]
    %v82 = vld [vmem:[%s1 + $0x90] sm:$0xf]
    %v83 = vld [vmem:[%s1 + $0x94] sm:$0xf]
    %v84 = vld [vmem:[%s1 + $0x98] sm:$0xf]
    %v85 = vld [vmem:[%s1 + $0x9c] sm:$0xf]
    %v86 = vld [vmem:[%s1 + $0xa0] sm:$0xf]
    %v87 = vld [vmem:[%s1 + $0xa4] sm:$0xf]
    %v88 = vld [vmem:[%s1 + $0xa8] sm:$0xf]
    %v89 = vld [vmem:[%s1 + $0xac] sm:$0xf]
    %v90 = vld [vmem:[%s1 + $0xb0] sm:$0xf]
    %v91 = vld [vmem:[%s1 + $0xb4] sm:$0xf]
    %v92 = vld [vmem:[%s1 + $0xb8] sm:$0xf]
    %v93 = vld [vmem:[%s1 + $0xbc] sm:$0xf]
    %v94 = vld [vmem:[%s1 + $0xc0] sm:$0xf]
    %v95 = vld [vmem:[%s1 + $0xc4] sm:$0xf]
    %v96 = vld [vmem:[%s1 + $0xc8] sm:$0xf]
    %v97 = vld [vmem:[%s1 + $0xcc] sm:$0xf]
    %v98 = vld [vmem:[%s1 + $0xd0] sm:$0xf]
    %v99 = vld [vmem:[%s1 + $0xd4] sm:$0xf]
    %v100 = vld [vmem:[%s1 + $0xd8] sm:$0xf]
    %v101 = vld [vmem:[%s1 + $0xdc] sm:$0xf]
    %v102 = vld [vmem:[%s1 + $0xe0] sm:$0xf]
    %v103 = vld [vmem:[%s1 + $0xe4] sm:$0xf]
    %v104 = vld [vmem:[%s1 + $0xe8] sm:$0xf]
    %v105 = vld [vmem:[%s1 + $0xec] sm:$0xf]
    %v106 = vld [vmem:[%s1 + $0xf0] sm:$0xf]
    %v107 = vld [vmem:[%s1 + $0xf4] sm:$0xf]
    %v108 = vld [vmem:[%s1 + $0xf8] sm:$0xf]
    %v109 = vld [vmem:[%s1 + $0xfc] sm:$0xf]
    %v110 = vld [vmem:[%s1 + $0x100] sm:$0xf]
    %v111 = vld [vmem:[%s1 + $0x104] sm:$0xf]
    %v112 = vld [vmem:[%s1 + $0x108] sm:$0xf]
    %v113 = vld [vmem:[%s1 + $0x10c] sm:$0xf]
    %v114 = vld [vmem:[%s1 + $0x110] sm:$0xf]
    %v115 = vld [vmem:[%s1 + $0x114] sm:$0xf]
    %v116 = vld [vmem:[%s1 + $0x118] sm:$0xf]
    %v117 = vld [vmem:[%s1 + $0x11c] sm:$0xf]
    %v118 = vld [vmem:[%s1 + $0x120] sm:$0xf]
    %v119 = vld [vmem:[%s1 + $0x124] sm:$0xf]
    %v120 = vld [vmem:[%s1 + $0x128] sm:$0xf]
    %v121 = vld [vmem:[%s1 + $0x12c] sm:$0xf]
    %v122 = vld [vmem:[%s1 + $0x130] sm:$0xf]
    %v123 = vld [vmem:[%s1 + $0x134] sm:$0xf]
    %v124 = vld [vmem:[%s1 + $0x138] sm:$0xf]
    %v125 = vld [vmem:[%s1 + $0x13c] sm:$0xf]
    %v126 = vld [vmem:[%s1 + $0x140] sm:$0xf]
    %v127 = vld [vmem:[%s1 + $0x144] sm:$0xf]
    %v128 = vld [vmem:[%s1 + $0x148] sm:$0xf]
    %v129 = vld [vmem:[%s1 + $0x14c] sm:$0xf]
    %v130 = vld [vmem:[%s1 + $0x150] sm:$0xf]
    %v131 = vld [vmem:[%s1 + $0x154] sm:$0xf]
    %v132 = vld [vmem:[%s1 + $0x158] sm:$0xf]
    %v133 = vld [vmem:[%s1 + $0x15c] sm:$0xf]
    %v134 = vld [vmem:[%s1 + $0x160] sm:$0xf]
    %v135 = vld [vmem:[%s1 + $0x164] sm:$0xf]
    %v136 = vld [vmem:[%s1 + $0x168] sm:$0xf]
    %v137 = vld [vmem:[%s1 + $0x16c] sm:$0xf]
    %v138 = vld [vmem:[%s1 + $0x170] sm:$0xf]
    %v139 = vld [vmem:[%s1 + $0x174] sm:$0xf]
    %v140 = vld [vmem:[%s1 + $0x178] sm:$0xf]
    %v141 = vld [vmem:[%s1 + $0x17c] sm:$0xf]
    %v142 = vld [vmem:[%s1 + $0x180] sm:$0xf]
    %v143 = vld [vmem:[%s1 + $0x184] sm:$0xf]
    %v242 = vunpack.c.l.b16 %v46
    %v243 = vunpack.c.l.b16 %v47
    %v244 = vunpack.c.l.b16 %v48
    %v245 = vunpack.c.l.b16 %v49
    %v246 = vunpack.c.l.b16 %v50
    %v247 = vunpack.c.l.b16 %v51
    %v248 = vunpack.c.l.b16 %v52
    %v249 = vunpack.c.l.b16 %v53
    %v250 = vunpack.c.l.b16 %v54
    %v251 = vunpack.c.l.b16 %v55
    %v252 = vunpack.c.l.b16 %v56
    %v253 = vunpack.c.l.b16 %v57
    %v254 = vunpack.c.l.b16 %v58
    %v255 = vunpack.c.l.b16 %v59
    %v256 = vunpack.c.l.b16 %v60
    %v257 = vunpack.c.l.b16 %v61
    %v258 = vunpack.c.l.b16 %v62
    %v259 = vunpack.c.l.b16 %v63
    %v260 = vunpack.c.l.b16 %v64
    %v261 = vunpack.c.l.b16 %v65
    %v262 = vunpack.c.l.b16 %v66
    %v263 = vunpack.c.l.b16 %v67
    %v264 = vunpack.c.l.b16 %v68
    %v265 = vunpack.c.l.b16 %v69
    %v266 = vunpack.c.l.b16 %v70
    %v267 = vunpack.c.l.b16 %v71
    %v268 = vunpack.c.l.b16 %v72
    %v269 = vunpack.c.l.b16 %v73
    %v270 = vunpack.c.l.b16 %v74
    %v271 = vunpack.c.l.b16 %v75
    %v272 = vunpack.c.l.b16 %v76
    %v273 = vunpack.c.l.b16 %v77
    %v274 = vunpack.c.l.b16 %v78
    %v275 = vunpack.c.l.b16 %v79
    %v276 = vunpack.c.l.b16 %v80
    %v277 = vunpack.c.l.b16 %v81
    %v278 = vunpack.c.l.b16 %v82
    %v279 = vunpack.c.l.b16 %v83
    %v280 = vunpack.c.l.b16 %v84
    %v281 = vunpack.c.l.b16 %v85
    %v282 = vunpack.c.l.b16 %v86
    %v283 = vunpack.c.l.b16 %v87
    %v284 = vunpack.c.l.b16 %v88
    %v285 = vunpack.c.l.b16 %v89
    %v286 = vunpack.c.l.b16 %v90
    %v287 = vunpack.c.l.b16 %v91
    %v288 = vunpack.c.l.b16 %v92
    %v289 = vunpack.c.l.b16 %v93
    %v290 = vunpack.c.l.b16 %v94
    %v291 = vunpack.c.l.b16 %v95
    %v292 = vunpack.c.l.b16 %v96
    %v293 = vunpack.c.l.b16 %v97
    %v294 = vunpack.c.l.b16 %v98
    %v295 = vunpack.c.l.b16 %v99
    %v296 = vunpack.c.l.b16 %v100
    %v297 = vunpack.c.l.b16 %v101
    %v298 = vunpack.c.l.b16 %v102
    %v299 = vunpack.c.l.b16 %v103
    %v300 = vunpack.c.l.b16 %v104
    %v301 = vunpack.c.l.b16 %v105
    %v302 = vunpack.c.l.b16 %v106
    %v303 = vunpack.c.l.b16 %v107
    %v304 = vunpack.c.l.b16 %v108
    %v305 = vunpack.c.l.b16 %v109
    %v306 = vunpack.c.l.b16 %v110
    %v307 = vunpack.c.l.b16 %v111
    %v308 = vunpack.c.l.b16 %v112
    %v309 = vunpack.c.l.b16 %v113
    %v310 = vunpack.c.l.b16 %v114
    %v311 = vunpack.c.l.b16 %v115
    %v312 = vunpack.c.l.b16 %v116
    %v313 = vunpack.c.l.b16 %v117
    %v314 = vunpack.c.l.b16 %v118
    %v315 = vunpack.c.l.b16 %v119
    %v316 = vunpack.c.l.b16 %v120
    %v317 = vunpack.c.l.b16 %v121
    %v318 = vunpack.c.l.b16 %v122
    %v319 = vunpack.c.l.b16 %v123
    %v320 = vunpack.c.l.b16 %v124
    %v321 = vunpack.c.l.b16 %v125
    %v322 = vunpack.c.l.b16 %v126
    %v323 = vunpack.c.l.b16 %v127
    %v324 = vunpack.c.l.b16 %v128
    %v325 = vunpack.c.l.b16 %v129
    %v326 = vunpack.c.l.b16 %v130
    %v327 = vunpack.c.l.b16 %v131
    %v328 = vunpack.c.l.b16 %v132
    %v329 = vunpack.c.l.b16 %v133
    %v330 = vunpack.c.l.b16 %v134
    %v331 = vunpack.c.l.b16 %v135
    %v332 = vunpack.c.l.b16 %v136
    %v333 = vunpack.c.l.b16 %v137
    %v334 = vunpack.c.l.b16 %v138
    %v335 = vunpack.c.l.b16 %v139
    %v336 = vunpack.c.l.b16 %v140
    %v337 = vunpack.c.l.b16 %v141
    %v338 = vunpack.c.l.b16 %v142
    %v339 = vunpack.c.l.b16 %v143
    %v340 = vpack.c.b16 %v243, %v242
    %v341 = vpack.c.b16 %v245, %v244
    %v342 = vpack.c.b16 %v247, %v246
    %v343 = vpack.c.b16 %v249, %v248
    %v344 = vpack.c.b16 %v251, %v250
    %v345 = vpack.c.b16 %v253, %v252
    %v346 = vpack.c.b16 %v255, %v254
    %v347 = vpack.c.b16 %v257, %v256
    %v348 = vpack.c.b16 %v259, %v258
    %v349 = vpack.c.b16 %v261, %v260
    %v350 = vpack.c.b16 %v263, %v262
    %v351 = vpack.c.b16 %v265, %v264
    %v352 = vpack.c.b16 %v267, %v266
    %v353 = vpack.c.b16 %v269, %v268
    %v354 = vpack.c.b16 %v271, %v270
    %v355 = vpack.c.b16 %v273, %v272
    %v356 = vpack.c.b16 %v275, %v274
    %v357 = vpack.c.b16 %v277, %v276
    %v358 = vpack.c.b16 %v279, %v278
    %v359 = vpack.c.b16 %v281, %v280
    %v360 = vpack.c.b16 %v283, %v282
    %v361 = vpack.c.b16 %v285, %v284
    %v362 = vpack.c.b16 %v287, %v286
    %v363 = vpack.c.b16 %v289, %v288
    %v364 = vpack.c.b16 %v291, %v290
    %v365 = vpack.c.b16 %v293, %v292
    %v366 = vpack.c.b16 %v295, %v294
    %v367 = vpack.c.b16 %v297, %v296
    %v368 = vpack.c.b16 %v299, %v298
    %v369 = vpack.c.b16 %v301, %v300
    %v370 = vpack.c.b16 %v303, %v302
    %v371 = vpack.c.b16 %v305, %v304
    %v372 = vpack.c.b16 %v307, %v306
    %v373 = vpack.c.b16 %v309, %v308
    %v374 = vpack.c.b16 %v311, %v310
    %v375 = vpack.c.b16 %v313, %v312
    %v376 = vpack.c.b16 %v315, %v314
    %v377 = vpack.c.b16 %v317, %v316
    %v378 = vpack.c.b16 %v319, %v318
    %v379 = vpack.c.b16 %v321, %v320
    %v380 = vpack.c.b16 %v323, %v322
    %v381 = vpack.c.b16 %v325, %v324
    %v382 = vpack.c.b16 %v327, %v326
    %v383 = vpack.c.b16 %v329, %v328
    %v384 = vpack.c.b16 %v331, %v330
    %v385 = vpack.c.b16 %v333, %v332
    %v386 = vpack.c.b16 %v335, %v334
    %v387 = vpack.c.b16 %v337, %v336
    %v388 = vpack.c.b16 %v339, %v338
    %vm438 = vcmask 130048
    %v440 = vsel %vm438, %v45, 0
    %442 = vmatpush.bf16.msra.mxu0 %v347
    %443 = vmatpush.bf16.msra.mxu0 %v346
    %444 = vmatpush.bf16.msra.mxu0 %v345
    %445 = vmatpush.bf16.msra.mxu0 %v344
    %446 = vmatpush.bf16.msra.mxu0 %v343
    %447 = vmatpush.bf16.msra.mxu0 %v342
    %448 = vmatpush.bf16.msra.mxu0 %v341
    %449 = vmatpush.bf16.msra.mxu0 %v340
    %450 = vmatmul.bf16.gmra.mxu0 %v39
    %v451 = vpop.f32.mrf.mxu0
    %v452 = vadd.f32 0.0, %v451
    %v453 = vpop.f32.mrf.mxu0
    %v454 = vadd.f32 0.0, %v453
    %455 = vdwg.mxu0
    %456 = vmatpush.bf16.msra.mxu0 %v355
    %457 = vmatpush.bf16.msra.mxu0 %v354
    %458 = vmatpush.bf16.msra.mxu0 %v353
    %459 = vmatpush.bf16.msra.mxu0 %v352
    %460 = vmatpush.bf16.msra.mxu0 %v351
    %461 = vmatpush.bf16.msra.mxu0 %v350
    %462 = vmatpush.bf16.msra.mxu0 %v349
    %463 = vmatpush.bf16.msra.mxu0 %v348
    %464 = vmatmul.bf16.gmra.mxu0 %v40
    %v465 = vpop.f32.mrf.mxu0
    %v466 = vadd.f32 %v452, %v465
    %v467 = vpop.f32.mrf.mxu0
    %v468 = vadd.f32 %v454, %v467
    %469 = vdwg.mxu0
    %470 = vmatpush.bf16.msra.mxu0 %v363
    %471 = vmatpush.bf16.msra.mxu0 %v362
    %472 = vmatpush.bf16.msra.mxu0 %v361
    %473 = vmatpush.bf16.msra.mxu0 %v360
    %474 = vmatpush.bf16.msra.mxu0 %v359
    %475 = vmatpush.bf16.msra.mxu0 %v358
    %476 = vmatpush.bf16.msra.mxu0 %v357
    %477 = vmatpush.bf16.msra.mxu0 %v356
    %478 = vmatmul.bf16.gmra.mxu0 %v41
    %v479 = vpop.f32.mrf.mxu0
    %v480 = vadd.f32 %v466, %v479
    %v481 = vpop.f32.mrf.mxu0
    %v482 = vadd.f32 %v468, %v481
    %483 = vdwg.mxu0
    %484 = vmatpush.bf16.msra.mxu0 %v371
    %485 = vmatpush.bf16.msra.mxu0 %v370
    %486 = vmatpush.bf16.msra.mxu0 %v369
    %487 = vmatpush.bf16.msra.mxu0 %v368
    %488 = vmatpush.bf16.msra.mxu0 %v367
    %489 = vmatpush.bf16.msra.mxu0 %v366
    %490 = vmatpush.bf16.msra.mxu0 %v365
    %491 = vmatpush.bf16.msra.mxu0 %v364
    %492 = vmatmul.bf16.gmra.mxu0 %v42
    %v493 = vpop.f32.mrf.mxu0
    %v494 = vadd.f32 %v480, %v493
    %v495 = vpop.f32.mrf.mxu0
    %v496 = vadd.f32 %v482, %v495
    %497 = vdwg.mxu0
    %498 = vmatpush.bf16.msra.mxu0 %v379
    %499 = vmatpush.bf16.msra.mxu0 %v378
    %500 = vmatpush.bf16.msra.mxu0 %v377
    %501 = vmatpush.bf16.msra.mxu0 %v376
    %502 = vmatpush.bf16.msra.mxu0 %v375
    %503 = vmatpush.bf16.msra.mxu0 %v374
    %504 = vmatpush.bf16.msra.mxu0 %v373
    %505 = vmatpush.bf16.msra.mxu0 %v372
    %506 = vmatmul.bf16.gmra.mxu0 %v43
    %v507 = vpop.f32.mrf.mxu0
    %v508 = vadd.f32 %v494, %v507
    %v509 = vpop.f32.mrf.mxu0
    %v510 = vadd.f32 %v496, %v509
    %511 = vdwg.mxu0
    %512 = vmatpush.bf16.msra.mxu0 %v387
    %513 = vmatpush.bf16.msra.mxu0 %v386
    %514 = vmatpush.bf16.msra.mxu0 %v385
    %515 = vmatpush.bf16.msra.mxu0 %v384
    %516 = vmatpush.bf16.msra.mxu0 %v383
    %517 = vmatpush.bf16.msra.mxu0 %v382
    %518 = vmatpush.bf16.msra.mxu0 %v381
    %519 = vmatpush.bf16.msra.mxu0 %v380
    %520 = vmatmul.bf16.gmra.mxu0 %v44
    %v521 = vpop.f32.mrf.mxu0
    %v522 = vadd.f32 %v508, %v521
    %v523 = vpop.f32.mrf.mxu0
    %v524 = vadd.f32 %v510, %v523
    %525 = vdwg.mxu0
    %526 = vmatpush.bf16.msra.mxu0 0
    %527 = vmatpush.bf16.msra.mxu0 0
    %528 = vmatpush.bf16.msra.mxu0 0
    %529 = vmatpush.bf16.msra.mxu0 0
    %530 = vmatpush.bf16.msra.mxu0 0
    %531 = vmatpush.bf16.msra.mxu0 0
    %532 = vmatpush.bf16.msra.mxu0 0
    %533 = vmatpush.bf16.msra.mxu0 %v388
    %534 = vmatmul.bf16.gmra.mxu0 %v440
    %v535 = vpop.f32.mrf.mxu0
    %v536 = vadd.f32 %v522, %v535
    %v537 = vpop.f32.mrf.mxu0
    %v538 = vadd.f32 %v524, %v537
    %539 = vdwg.mxu0
    %v540 = vmax.f32 %v536, 0.0
    %v541 = vmax.f32 %v538, 0.0
    %v542 = vpack.c.bf16 %v541, %v540
    %v543 = vld [vmem:[%s2] sm:$0xf]
    %v544 = vld [vmem:[%s2 + $0x4] sm:$0xf]
    %v547 = vunpack.c.l.b16 %v543
    %v548 = vunpack.c.l.b16 %v544
    %v549 = vpack.c.b16 %v548, %v547
    %v552 = vsel %vm438, %v542, 0
    %554 = vmatpush.bf16.msra.mxu0 0
    %555 = vmatpush.bf16.msra.mxu0 0
    %556 = vmatpush.bf16.msra.mxu0 0
    %557 = vmatpush.bf16.msra.mxu0 0
    %558 = vmatpush.bf16.msra.mxu0 0
    %559 = vmatpush.bf16.msra.mxu0 0
    %560 = vmatpush.bf16.msra.mxu0 0
    %561 = vmatpush.bf16.msra.mxu0 %v549
    %562 = vmatmul.bf16.gmra.mxu0 %v552
    %v563 = vpop.f32.mrf.mxu0
    %v564 = vadd.f32 0.0, %v563
    %v565 = vpop.f32.mrf.mxu0
    %v566 = vadd.f32 0.0, %v565
    %567 = vdwg.mxu0
    %v568 = vmax.f32 %v564, 0.0
    %v569 = vmax.f32 %v566, 0.0
    %v570 = vpack.c.bf16 %v569, %v568
    %v571 = vld [vmem:[%s3] sm:$0xf]
    %v572 = vld [vmem:[%s3 + $0x4] sm:$0xf]
    %v575 = vunpack.c.l.b16 %v571
    %v576 = vunpack.c.l.b16 %v572
    %v577 = vpack.c.b16 %v576, %v575
    %v580 = vsel %vm438, %v570, 0
    %582 = vmatpush.bf16.msra.mxu0 0
    %583 = vmatpush.bf16.msra.mxu0 0
    %584 = vmatpush.bf16.msra.mxu0 0
    %585 = vmatpush.bf16.msra.mxu0 0
    %586 = vmatpush.bf16.msra.mxu0 0
    %587 = vmatpush.bf16.msra.mxu0 0
    %588 = vmatpush.bf16.msra.mxu0 0
    %589 = vmatpush.bf16.msra.mxu0 %v577
    %590 = vmatmul.bf16.gmra.mxu0 %v580
    %v591 = vpop.f32.mrf.mxu0
    %v592 = vadd.f32 0.0, %v591
    %v593 = vpop.f32.mrf.mxu0
    %v594 = vadd.f32 0.0, %v593
    %595 = vdwg.mxu0
    %v596 = vmax.f32 %v592, 0.0
    %v597 = vmax.f32 %v594, 0.0
    %v598 = vpack.c.bf16 %v597, %v596
    %v599 = vld [vmem:[%s4] sm:$0xf]
    %v600 = vld [vmem:[%s4 + $0x4] sm:$0xf]
    %v603 = vunpack.c.l.b16 %v599
    %v604 = vunpack.c.l.b16 %v600
    %v605 = vpack.c.b16 %v604, %v603
    %v608 = vsel %vm438, %v598, 0
    %610 = vmatpush.bf16.msra.mxu0 0
    %611 = vmatpush.bf16.msra.mxu0 0
    %612 = vmatpush.bf16.msra.mxu0 0
    %613 = vmatpush.bf16.msra.mxu0 0
    %614 = vmatpush.bf16.msra.mxu0 0
    %615 = vmatpush.bf16.msra.mxu0 0
    %616 = vmatpush.bf16.msra.mxu0 0
    %617 = vmatpush.bf16.msra.mxu0 %v605
    %618 = vmatmul.bf16.gmra.mxu0 %v608
    %v619 = vpop.f32.mrf.mxu0
    %v620 = vadd.f32 0.0, %v619
    %v621 = vpop.f32.mrf.mxu0
    %v622 = vadd.f32 0.0, %v621
    %623 = vdwg.mxu0
    %v624 = vmax.f32 %v620, 0.0
    %v625 = vmax.f32 %v622, 0.0
    %v626 = vpack.c.bf16 %v625, %v624
    %v627 = vld [vmem:[%s5] sm:$0xf]
    %v628 = vld [vmem:[%s5 + $0x4] sm:$0xf]
    %v631 = vunpack.c.l.b16 %v627
    %v632 = vunpack.c.l.b16 %v628
    %v633 = vpack.c.b16 %v632, %v631
    %v636 = vsel %vm438, %v626, 0
    %638 = vmatpush.bf16.msra.mxu0 0
    %639 = vmatpush.bf16.msra.mxu0 0
    %640 = vmatpush.bf16.msra.mxu0 0
    %641 = vmatpush.bf16.msra.mxu0 0
    %642 = vmatpush.bf16.msra.mxu0 0
    %643 = vmatpush.bf16.msra.mxu0 0
    %644 = vmatpush.bf16.msra.mxu0 0
    %645 = vmatpush.bf16.msra.mxu0 %v633
    %646 = vmatmul.bf16.gmra.mxu0 %v636
    %v647 = vpop.f32.mrf.mxu0
    %v648 = vadd.f32 0.0, %v647
    %v649 = vpop.f32.mrf.mxu0
    %v650 = vadd.f32 0.0, %v649
    %651 = vdwg.mxu0
    %vm652 = vcmask 80896
    %653 = vst.msk [vmem:[#allocation2] sm:$0xff] %vm652, %v648
    %654 = vst.msk [vmem:[#allocation2 + $0x8] sm:$0xff] %vm652, %v650
    // Predicated region
    $region26: #{mlp_forward.1} parent=1 // pred_check
      _
    $region27: #{mlp_forward.1} parent=1 // pred_check_branch
      %656 = sbr.rel (0) target = $region29
    $region28: #{mlp_forward.1} parent=1 // pred_region
      %658 = vsyncadd [#allocation3], 0
      %s659 = sshll.u32 [#allocation2], 4
      %s660 = int_to_ptr.vmem [resolvable:$true] %s659
      %s661 = sshll.u32 %s6, 4
      %s662 = int_to_ptr.hbm [resolvable:$true] %s661
      %667 = dma.vmem_to_hbm [thread:$0]  %s660, 256, %s662, [#allocation3], 128, 128, 8
    $region29: #{mlp_forward.1} parent=1 // pred_fallthru
      _
    // Predicated region
    $region30: #{mlp_forward.1} parent=1 // pred_check
      _
    $region31: #{mlp_forward.1} parent=1 // pred_check_branch
      %669 = sbr.rel (0) target = $region33
    $region32: #{mlp_forward.1} parent=1 // pred_region
      %671 = dma.done [#allocation3], 256
    $region33: #{mlp_forward.1} parent=1 // pred_fallthru
      _
    %672 = vsyncpa [#allocation3], 1

</llo_original>
